<compile_context>
chip_gen: v7x
topology: tpu7x:2x2x1
jax: 0.10.0
libtpu: 0.0.40
codegen_flags: <defaults>
</compile_context>

<pallas_src>
import math

import jax
import jax.numpy as jnp
from jax.experimental import pallas as pl
from jax.experimental.pallas import tpu as pltpu

_NOISE_STD = 0.1 ** 0.5
_NEG_SLOPE = 0.1  # LeakyReLU(0.1), matching the PyTorch module


def _leaky_relu(x, slope=_NEG_SLOPE):
    return jnp.where(x > 0, x, slope * x)


def disc_mlp_kernel(x_ref, w1, b1, w2, b2, w3, b3, w4, b4, w5, b5, o_ref):
    """(noisy x, bf16) -> [Linear + LeakyReLU(0.1)] x4 -> Linear(., 1) -> Sigmoid.

    Hidden matmuls run on the MXU with bf16 operands / f32 accumulation; all
    elementwise math (bias, LeakyReLU, sigmoid) stays in f32 (v5e-safe). The
    final (d4 -> 1) layer is a VPU broadcast-mul + cross-lane reduce, stored
    lane-dense as a (1, TB) row.
    """
    # TODO(synk): Dropout(p=0.3) layers are identity here (inference semantics).

    def dense_lrelu(h_lo, w_ref, b_ref):
        acc = jnp.dot(h_lo, w_ref[...], preferred_element_type=jnp.float32)
        return _leaky_relu(acc + b_ref[...])

    h = dense_lrelu(x_ref[...], w1, b1)                     # (TB, d1) f32
    h = dense_lrelu(h.astype(jnp.bfloat16), w2, b2)
    h = dense_lrelu(h.astype(jnp.bfloat16), w3, b3)
    h = dense_lrelu(h.astype(jnp.bfloat16), w4, b4)

    # Final (d4 -> 1) layer: broadcast-mul + cross-lane reduce (no MXU pop for
    # a single output lane).
    logit = jnp.sum(h * w5[...], axis=-1) + b5[...].reshape(-1)   # (TB,)

    # Sigmoid via a single EUP tanh; exactly bounded in [0, 1].
    prob = 0.5 + 0.5 * jnp.tanh(0.5 * logit)
    o_ref[...] = prob.reshape(1, -1).astype(o_ref.dtype)         # lane-dense (1, TB)


def _round_up(x, m):
    return ((x + m - 1) // m) * m


def _batch_tile(batch, in_dim, itemsize=2):
    """Pick the batch tile.

    * Large (up to 2048) to amortize the ~0.35 us per-grid-step overhead.
    * Capped so the double-buffered bf16 x stream stays well inside the v5e
      16 MiB default scoped VMEM (so no vmem_limit_bytes override is needed).
    * Multiple of 128 when tiled, so the (1, TB) output store is lane-dense.
    * Batches > 256 always split into >= 2 grid steps so the "parallel" grid
      axis shards across both v7x TensorCores.
    """
    budget = 4 * 1024 * 1024                                  # per x buffer (x2 buffers)
    cap = max(128, (budget // max(1, in_dim * itemsize)) // 128 * 128)
    if batch <= min(256, cap):
        return batch                                          # one full-extent tile
    return min(2048, cap, _round_up(pl.cdiv(batch, 2), 128))


def discriminator_forward(seq, objectives, params, noise_key):
    """seq: (B, num_classes, L), objectives: (B, objective_dim, L) -> (B, 1) f32."""
    B = seq.shape[0]

    # torch.cat(dim=1) + view(B, -1) + gaussian input noise, fused with the
    # bf16 downcast so only one (B, in_dim) bf16 array is produced (half the
    # f32 HBM traffic); allow_input_fusion below lets XLA fuse this producer
    # into the pallas_call input stream.
    x = jnp.concatenate([seq, objectives], axis=1).reshape(B, -1).astype(jnp.float32)
    x = x + _NOISE_STD * jax.random.normal(noise_key, x.shape, jnp.float32)
    x = x.astype(jnp.bfloat16)
    in_dim = x.shape[1]

    (w1, b1), (w2, b2), (w3, b3), (w4, b4), (w5, b5) = params

    tb = _batch_tile(B, in_dim)
    num_tiles = pl.cdiv(B, tb)
    padded_b = num_tiles * tb

    # Untiled VMEM-resident weights/biases: DMA'd once, never double-buffered.
    resident = pl.BlockSpec(memory_space=pltpu.MemorySpace.VMEM)

    out_row = pl.pallas_call(
        disc_mlp_kernel,
        out_shape=jax.ShapeDtypeStruct((1, padded_b), jnp.float32),
        grid=(num_tiles,),
        in_specs=[
            pl.BlockSpec((tb, in_dim), lambda i: (i, 0)),     # x: batch-tiled stream
            resident, resident,                               # w1, b1
            resident, resident,                               # w2, b2
            resident, resident,                               # w3, b3
            resident, resident,                               # w4, b4
            resident, resident,                               # w5, b5
        ],
        out_specs=pl.BlockSpec((1, tb), lambda i: (0, i)),    # lane-dense output row
        compiler_params=pltpu.CompilerParams(
            dimension_semantics=("parallel",),
            allow_input_fusion=[True] + [False] * 10,
        ),
    )(x, w1, b1, w2, b2, w3, b3, w4, b4, w5, b5)

    return out_row[0, :B].reshape(B, 1)


def _xavier_uniform(key, fan_in, fan_out, dtype):
    """Xavier-uniform for a torch Linear weight, returned in (in, out) layout."""
    bound = math.sqrt(6.0 / (fan_in + fan_out))
    return jax.random.uniform(key, (fan_in, fan_out), jnp.float32,
                              -bound, bound).astype(dtype)


def init_discriminator_params(key, seq_length, discriminator_layer_size,
                              objective_dim, num_classes=22):
    in_dim = num_classes * seq_length + objective_dim * seq_length
    dims = [in_dim,
            discriminator_layer_size[1],
            discriminator_layer_size[2],
            discriminator_layer_size[3],
            discriminator_layer_size[4],
            1]
    params = []
    for i in range(len(dims) - 1):
        key, sub = jax.random.split(key)
        if i == len(dims) - 2:
            # Final layer applied on the VPU as a broadcast row: (1, d4) f32.
            w = _xavier_uniform(sub, dims[i], dims[i + 1], jnp.float32).T
        else:
            # Hidden layers: (in, out) layout, bf16 MXU operands.
            w = _xavier_uniform(sub, dims[i], dims[i + 1], jnp.bfloat16)
        b = jnp.full((1, dims[i + 1]), 0.01, dtype=jnp.float32)  # constant_(bias, 0.01)
        params.append((w, b))
    return params


if __name__ == "__main__":
    # Small shapes consistent with the module.
    B = 2
    seq_length = 8
    num_classes = 22
    objective_dim = 4
    discriminator_layer_size = [None, 64, 64, 32, 32]  # indices 1..4 are used

    key = jax.random.PRNGKey(0)
    k_seq, k_obj, k_params, k_noise = jax.random.split(key, 4)

    seq = jax.random.normal(k_seq, (B, num_classes, seq_length), dtype=jnp.float32)
    objectives = jax.random.normal(k_obj, (B, objective_dim, seq_length),
                                   dtype=jnp.float32)

    params = init_discriminator_params(
        k_params, seq_length, discriminator_layer_size, objective_dim, num_classes)

    out = discriminator_forward(seq, objectives, params, k_noise)
    out = jax.block_until_ready(out)

    assert out.shape == (B, 1)
    assert bool(jnp.all(jnp.isfinite(out)))
    assert bool(jnp.all((out >= 0.0) & (out <= 1.0)))
    print("KERNEL_OK")
</pallas_src>

<mosaic_0001>
module attributes {stable_mosaic.version = 11 : i64} {
  func.func @disc_mlp_kernel(%arg0: i32, %arg1: memref<2x208xbf16, #tpu.memory_space<vmem>>, %arg2: memref<208x64xbf16, #tpu.memory_space<vmem>>, %arg3: memref<1x64xf32, #tpu.memory_space<vmem>>, %arg4: memref<64x64xbf16, #tpu.memory_space<vmem>>, %arg5: memref<1x64xf32, #tpu.memory_space<vmem>>, %arg6: memref<64x32xbf16, #tpu.memory_space<vmem>>, %arg7: memref<1x32xf32, #tpu.memory_space<vmem>>, %arg8: memref<32x32xbf16, #tpu.memory_space<vmem>>, %arg9: memref<1x32xf32, #tpu.memory_space<vmem>>, %arg10: memref<1x32xf32, #tpu.memory_space<vmem>>, %arg11: memref<1x1xf32, #tpu.memory_space<vmem>>, %arg12: memref<1x2xf32, #tpu.memory_space<vmem>>) attributes {dimension_semantics = [#tpu.dimension_semantics<parallel>], iteration_bounds = array<i64: 1>, scalar_prefetch = 0 : i64, scratch_operands = 0 : i64, tpu.core_type = #tpu.core_type<tc>, window_params = [{transform_indices = @transform_0, window_bounds = array<i64: 2, 208>}, {pipeline_mode = #tpu.pipeline_mode<synchronous>, transform_indices = @transform_1, window_bounds = array<i64: 208, 64>}, {pipeline_mode = #tpu.pipeline_mode<synchronous>, transform_indices = @transform_2, window_bounds = array<i64: 1, 64>}, {pipeline_mode = #tpu.pipeline_mode<synchronous>, transform_indices = @transform_3, window_bounds = array<i64: 64, 64>}, {pipeline_mode = #tpu.pipeline_mode<synchronous>, transform_indices = @transform_4, window_bounds = array<i64: 1, 64>}, {pipeline_mode = #tpu.pipeline_mode<synchronous>, transform_indices = @transform_5, window_bounds = array<i64: 64, 32>}, {pipeline_mode = #tpu.pipeline_mode<synchronous>, transform_indices = @transform_6, window_bounds = array<i64: 1, 32>}, {pipeline_mode = #tpu.pipeline_mode<synchronous>, transform_indices = @transform_7, window_bounds = array<i64: 32, 32>}, {pipeline_mode = #tpu.pipeline_mode<synchronous>, transform_indices = @transform_8, window_bounds = array<i64: 1, 32>}, {pipeline_mode = #tpu.pipeline_mode<synchronous>, transform_indices = @transform_9, window_bounds = array<i64: 1, 32>}, {pipeline_mode = #tpu.pipeline_mode<synchronous>, transform_indices = @transform_10, window_bounds = array<i64: 1, 1>}, {transform_indices = @transform_11, window_bounds = array<i64: 1, 2>}]} {
    %c0 = arith.constant 0 : index
    %c0_0 = arith.constant 0 : index
    %0 = vector.load %arg1[%c0, %c0_0] : memref<2x208xbf16, #tpu.memory_space<vmem>>, vector<2x208xbf16>
    %c0_1 = arith.constant 0 : index
    %c0_2 = arith.constant 0 : index
    %1 = vector.load %arg2[%c0_1, %c0_2] : memref<208x64xbf16, #tpu.memory_space<vmem>>, vector<208x64xbf16>
    %cst = arith.constant dense<0.000000e+00> : vector<2x64xf32>
    %2 = tpu.matmul %0, %1, %cst {dimension_numbers = #tpu.dot_dimension_numbers<[1], [0], [0], [1], [0, 0, 1, 1], [], []>} : vector<2x208xbf16>, vector<208x64xbf16>, vector<2x64xf32> -> vector<2x64xf32>
    %c0_3 = arith.constant 0 : index
    %c0_4 = arith.constant 0 : index
    %3 = vector.load %arg3[%c0_3, %c0_4] : memref<1x64xf32, #tpu.memory_space<vmem>>, vector<1x64xf32>
    %4 = vector.broadcast %3 : vector<1x64xf32> to vector<2x64xf32>
    %5 = arith.addf %2, %4 : vector<2x64xf32>
    %cst_5 = arith.constant 0.000000e+00 : f32
    %6 = vector.broadcast %cst_5 : f32 to vector<2x64xf32>
    %7 = arith.cmpf ogt, %5, %6 : vector<2x64xf32>
    %cst_6 = arith.constant 1.000000e-01 : f32
    %8 = vector.broadcast %cst_6 : f32 to vector<2x64xf32>
    %9 = arith.mulf %8, %5 : vector<2x64xf32>
    %10 = arith.select %7, %5, %9 : vector<2x64xi1>, vector<2x64xf32>
    %11 = arith.truncf %10 : vector<2x64xf32> to vector<2x64xbf16>
    %c0_7 = arith.constant 0 : index
    %c0_8 = arith.constant 0 : index
    %12 = vector.load %arg4[%c0_7, %c0_8] : memref<64x64xbf16, #tpu.memory_space<vmem>>, vector<64x64xbf16>
    %cst_9 = arith.constant dense<0.000000e+00> : vector<2x64xf32>
    %13 = tpu.matmul %11, %12, %cst_9 {dimension_numbers = #tpu.dot_dimension_numbers<[1], [0], [0], [1], [0, 0, 1, 1], [], []>} : vector<2x64xbf16>, vector<64x64xbf16>, vector<2x64xf32> -> vector<2x64xf32>
    %c0_10 = arith.constant 0 : index
    %c0_11 = arith.constant 0 : index
    %14 = vector.load %arg5[%c0_10, %c0_11] : memref<1x64xf32, #tpu.memory_space<vmem>>, vector<1x64xf32>
    %15 = vector.broadcast %14 : vector<1x64xf32> to vector<2x64xf32>
    %16 = arith.addf %13, %15 : vector<2x64xf32>
    %cst_12 = arith.constant 0.000000e+00 : f32
    %17 = vector.broadcast %cst_12 : f32 to vector<2x64xf32>
    %18 = arith.cmpf ogt, %16, %17 : vector<2x64xf32>
    %cst_13 = arith.constant 1.000000e-01 : f32
    %19 = vector.broadcast %cst_13 : f32 to vector<2x64xf32>
    %20 = arith.mulf %19, %16 : vector<2x64xf32>
    %21 = arith.select %18, %16, %20 : vector<2x64xi1>, vector<2x64xf32>
    %22 = arith.truncf %21 : vector<2x64xf32> to vector<2x64xbf16>
    %c0_14 = arith.constant 0 : index
    %c0_15 = arith.constant 0 : index
    %23 = vector.load %arg6[%c0_14, %c0_15] : memref<64x32xbf16, #tpu.memory_space<vmem>>, vector<64x32xbf16>
    %cst_16 = arith.constant dense<0.000000e+00> : vector<2x32xf32>
    %24 = tpu.matmul %22, %23, %cst_16 {dimension_numbers = #tpu.dot_dimension_numbers<[1], [0], [0], [1], [0, 0, 1, 1], [], []>} : vector<2x64xbf16>, vector<64x32xbf16>, vector<2x32xf32> -> vector<2x32xf32>
    %c0_17 = arith.constant 0 : index
    %c0_18 = arith.constant 0 : index
    %25 = vector.load %arg7[%c0_17, %c0_18] : memref<1x32xf32, #tpu.memory_space<vmem>>, vector<1x32xf32>
    %26 = vector.broadcast %25 : vector<1x32xf32> to vector<2x32xf32>
    %27 = arith.addf %24, %26 : vector<2x32xf32>
    %cst_19 = arith.constant 0.000000e+00 : f32
    %28 = vector.broadcast %cst_19 : f32 to vector<2x32xf32>
    %29 = arith.cmpf ogt, %27, %28 : vector<2x32xf32>
    %cst_20 = arith.constant 1.000000e-01 : f32
    %30 = vector.broadcast %cst_20 : f32 to vector<2x32xf32>
    %31 = arith.mulf %30, %27 : vector<2x32xf32>
    %32 = arith.select %29, %27, %31 : vector<2x32xi1>, vector<2x32xf32>
    %33 = arith.truncf %32 : vector<2x32xf32> to vector<2x32xbf16>
    %c0_21 = arith.constant 0 : index
    %c0_22 = arith.constant 0 : index
    %34 = vector.load %arg8[%c0_21, %c0_22] : memref<32x32xbf16, #tpu.memory_space<vmem>>, vector<32x32xbf16>
    %cst_23 = arith.constant dense<0.000000e+00> : vector<2x32xf32>
    %35 = tpu.matmul %33, %34, %cst_23 {dimension_numbers = #tpu.dot_dimension_numbers<[1], [0], [0], [1], [0, 0, 1, 1], [], []>} : vector<2x32xbf16>, vector<32x32xbf16>, vector<2x32xf32> -> vector<2x32xf32>
    %c0_24 = arith.constant 0 : index
    %c0_25 = arith.constant 0 : index
    %36 = vector.load %arg9[%c0_24, %c0_25] : memref<1x32xf32, #tpu.memory_space<vmem>>, vector<1x32xf32>
    %37 = vector.broadcast %36 : vector<1x32xf32> to vector<2x32xf32>
    %38 = arith.addf %35, %37 : vector<2x32xf32>
    %cst_26 = arith.constant 0.000000e+00 : f32
    %39 = vector.broadcast %cst_26 : f32 to vector<2x32xf32>
    %40 = arith.cmpf ogt, %38, %39 : vector<2x32xf32>
    %cst_27 = arith.constant 1.000000e-01 : f32
    %41 = vector.broadcast %cst_27 : f32 to vector<2x32xf32>
    %42 = arith.mulf %41, %38 : vector<2x32xf32>
    %43 = arith.select %40, %38, %42 : vector<2x32xi1>, vector<2x32xf32>
    %c0_28 = arith.constant 0 : index
    %c0_29 = arith.constant 0 : index
    %44 = vector.load %arg10[%c0_28, %c0_29] : memref<1x32xf32, #tpu.memory_space<vmem>>, vector<1x32xf32>
    %45 = vector.broadcast %44 : vector<1x32xf32> to vector<2x32xf32>
    %46 = arith.mulf %43, %45 : vector<2x32xf32>
    %cst_30 = arith.constant dense<0.000000e+00> : vector<2xf32>
    %47 = vector.multi_reduction <add>, %46, %cst_30 [1] : vector<2x32xf32> to vector<2xf32>
    %c0_31 = arith.constant 0 : index
    %c0_32 = arith.constant 0 : index
    %48 = vector.load %arg11[%c0_31, %c0_32] : memref<1x1xf32, #tpu.memory_space<vmem>>, vector<1x1xf32>
    %49 = vector.shape_cast %48 : vector<1x1xf32> to vector<1xf32>
    %50 = vector.broadcast %49 : vector<1xf32> to vector<2xf32>
    %51 = arith.addf %47, %50 : vector<2xf32>
    %cst_33 = arith.constant 5.000000e-01 : f32
    %52 = vector.broadcast %cst_33 : f32 to vector<2xf32>
    %53 = arith.mulf %52, %51 : vector<2xf32>
    %54 = math.tanh %53 : vector<2xf32>
    %cst_34 = arith.constant 5.000000e-01 : f32
    %55 = vector.broadcast %cst_34 : f32 to vector<2xf32>
    %56 = arith.mulf %55, %54 : vector<2xf32>
    %cst_35 = arith.constant 5.000000e-01 : f32
    %57 = vector.broadcast %cst_35 : f32 to vector<2xf32>
    %58 = arith.addf %57, %56 : vector<2xf32>
    %59 = vector.shape_cast %58 : vector<2xf32> to vector<1x2xf32>
    %c0_36 = arith.constant 0 : index
    %c0_37 = arith.constant 0 : index
    %60 = vector.load %arg12[%c0_36, %c0_37] : memref<1x2xf32, #tpu.memory_space<vmem>>, vector<1x2xf32>
    tpu.vector_store %arg12[%c0_36, %c0_37], %59 {strides = array<i32>} : memref<1x2xf32, #tpu.memory_space<vmem>>, vector<1x2xf32>,
    return
  }
  func.func @transform_0(%arg0: i32) -> (i32, i32) {
    %c0_i32 = arith.constant 0 : i32
    %c0_i32_0 = arith.constant 0 : i32
    return %arg0, %c0_i32 : i32, i32
  }
  func.func @transform_1(%arg0: i32) -> (i32, i32) {
    %c0_i32 = arith.constant 0 : i32
    %c0_i32_0 = arith.constant 0 : i32
    %c0_i32_1 = arith.constant 0 : i32
    return %c0_i32, %c0_i32_0 : i32, i32
  }
  func.func @transform_2(%arg0: i32) -> (i32, i32) {
    %c0_i32 = arith.constant 0 : i32
    %c0_i32_0 = arith.constant 0 : i32
    %c0_i32_1 = arith.constant 0 : i32
    return %c0_i32, %c0_i32_0 : i32, i32
  }
  func.func @transform_3(%arg0: i32) -> (i32, i32) {
    %c0_i32 = arith.constant 0 : i32
    %c0_i32_0 = arith.constant 0 : i32
    %c0_i32_1 = arith.constant 0 : i32
    return %c0_i32, %c0_i32_0 : i32, i32
  }
  func.func @transform_4(%arg0: i32) -> (i32, i32) {
    %c0_i32 = arith.constant 0 : i32
    %c0_i32_0 = arith.constant 0 : i32
    %c0_i32_1 = arith.constant 0 : i32
    return %c0_i32, %c0_i32_0 : i32, i32
  }
  func.func @transform_5(%arg0: i32) -> (i32, i32) {
    %c0_i32 = arith.constant 0 : i32
    %c0_i32_0 = arith.constant 0 : i32
    %c0_i32_1 = arith.constant 0 : i32
    return %c0_i32, %c0_i32_0 : i32, i32
  }
  func.func @transform_6(%arg0: i32) -> (i32, i32) {
    %c0_i32 = arith.constant 0 : i32
    %c0_i32_0 = arith.constant 0 : i32
    %c0_i32_1 = arith.constant 0 : i32
    return %c0_i32, %c0_i32_0 : i32, i32
  }
  func.func @transform_7(%arg0: i32) -> (i32, i32) {
    %c0_i32 = arith.constant 0 : i32
    %c0_i32_0 = arith.constant 0 : i32
    %c0_i32_1 = arith.constant 0 : i32
    return %c0_i32, %c0_i32_0 : i32, i32
  }
  func.func @transform_8(%arg0: i32) -> (i32, i32) {
    %c0_i32 = arith.constant 0 : i32
    %c0_i32_0 = arith.constant 0 : i32
    %c0_i32_1 = arith.constant 0 : i32
    return %c0_i32, %c0_i32_0 : i32, i32
  }
  func.func @transform_9(%arg0: i32) -> (i32, i32) {
    %c0_i32 = arith.constant 0 : i32
    %c0_i32_0 = arith.constant 0 : i32
    %c0_i32_1 = arith.constant 0 : i32
    return %c0_i32, %c0_i32_0 : i32, i32
  }
  func.func @transform_10(%arg0: i32) -> (i32, i32) {
    %c0_i32 = arith.constant 0 : i32
    %c0_i32_0 = arith.constant 0 : i32
    %c0_i32_1 = arith.constant 0 : i32
    return %c0_i32, %c0_i32_0 : i32, i32
  }
  func.func @transform_11(%arg0: i32) -> (i32, i32) {
    %c0_i32 = arith.constant 0 : i32
    %c0_i32_0 = arith.constant 0 : i32
    return %c0_i32, %arg0 : i32, i32
  }
}

</mosaic_0001>

<llo_original>
// kernel: tpu_custom_call.1
$region0: #{tpu_custom_call.1}
  #allocation0 [shape = 'u32[]', space=smem, size = 0x4, offset = 0x4, fixed_abs, tag = 'smem constant byte address 0x4 - core index']
  #allocation1 [shape = 'u32[144,128]{1,0:T(1,128)}', space=vmem, size = 0x12000, scoped, tag = 'internal scratch']
  #allocation2 [shape = 'f32[1,1]{1,0:T(1,128)S(1)}', space=vmem, size = 0x200, scoped, tag = 'scoped memory for tpu_custom_call.1']
  %s0 = inlined_call_operand.vmem [shape: bf16[2,208], index: 0, kind: input, shape index: {}]
  %s1 = inlined_call_operand.vmem [shape: bf16[208,64], index: 1, kind: input, shape index: {}]
  %s2 = inlined_call_operand.vmem [shape: f32[1,64], index: 2, kind: input, shape index: {}]
  %s3 = inlined_call_operand.vmem [shape: bf16[64,64], index: 3, kind: input, shape index: {}]
  %s4 = inlined_call_operand.vmem [shape: f32[1,64], index: 4, kind: input, shape index: {}]
  %s5 = inlined_call_operand.vmem [shape: bf16[64,32], index: 5, kind: input, shape index: {}]
  %s6 = inlined_call_operand.vmem [shape: f32[1,32], index: 6, kind: input, shape index: {}]
  %s7 = inlined_call_operand.vmem [shape: bf16[32,32], index: 7, kind: input, shape index: {}]
  %s8 = inlined_call_operand.vmem [shape: f32[1,32], index: 8, kind: input, shape index: {}]
  %s9 = inlined_call_operand.vmem [shape: f32[1,32], index: 9, kind: input, shape index: {}]
  %s10 = inlined_call_operand.<no memory space> [shape: f32[1,1], index: 10, kind: input, shape index: {}]
  %s11 = inlined_call_operand.hbm [shape: f32[1,2], index: 11, kind: output, shape index: {}]
  %s12 = sld [smem:[#allocation0]]
  $region54: #{tpu_custom_call.1} parent=0
    _
  %s14 = ssub.s32 1, %s12
  %s15 = scalar_select 0, %s14, %s12
  %v16 = vstv %s10
  %17 = vst [vmem:[#allocation2] sm:$0x1] %v16
  $region1: #{tpu_custom_call.1} parent=0
    #allocation3 [shape = 'u8[512]{0}', space=vmem, size = 0x400, scoped, tag = 'output window, operand 0, single buffered']
    #allocation4 [shape = 's32[1]{0}', space=sflag, size = 0x4, scoped, tag = 'scoped memory for tpu_custom_call.1']
    %18 = vsyncpa [#allocation4], 0
    // Predicated region
    $region2: #{tpu_custom_call.1} parent=1 // pred_check
      _
    $region3: #{tpu_custom_call.1} parent=1 // pred_check_branch
      %20 = sbr.rel (0) target = $region5
    $region4: #{tpu_custom_call.1} parent=1 // pred_region
      _
    $region5: #{tpu_custom_call.1} parent=1 // pred_fallthru
      _
    // Predicated region
    $region6: #{tpu_custom_call.1} parent=1 // pred_check
      _
    $region7: #{tpu_custom_call.1} parent=1 // pred_check_branch
      %22 = sbr.rel (0) target = $region9
    $region8: #{tpu_custom_call.1} parent=1 // pred_region
      _
    $region9: #{tpu_custom_call.1} parent=1 // pred_fallthru
      _
    // Predicated region
    $region10: #{tpu_custom_call.1} parent=1 // pred_check
      _
    $region11: #{tpu_custom_call.1} parent=1 // pred_check_branch
      %24 = sbr.rel (0) target = $region13
    $region12: #{tpu_custom_call.1} parent=1 // pred_region
      _
    $region13: #{tpu_custom_call.1} parent=1 // pred_fallthru
      _
    // Predicated region
    $region14: #{tpu_custom_call.1} parent=1 // pred_check
      _
    $region15: #{tpu_custom_call.1} parent=1 // pred_check_branch
      %26 = sbr.rel (0) target = $region17
    $region16: #{tpu_custom_call.1} parent=1 // pred_region
      _
    $region17: #{tpu_custom_call.1} parent=1 // pred_fallthru
      _
    // Predicated region
    $region18: #{tpu_custom_call.1} parent=1 // pred_check
      _
    $region19: #{tpu_custom_call.1} parent=1 // pred_check_branch
      %28 = sbr.rel (0) target = $region21
    $region20: #{tpu_custom_call.1} parent=1 // pred_region
      _
    $region21: #{tpu_custom_call.1} parent=1 // pred_fallthru
      _
    // Predicated region
    $region22: #{tpu_custom_call.1} parent=1 // pred_check
      _
    $region23: #{tpu_custom_call.1} parent=1 // pred_check_branch
      %30 = sbr.rel (0) target = $region25
    $region24: #{tpu_custom_call.1} parent=1 // pred_region
      _
    $region25: #{tpu_custom_call.1} parent=1 // pred_fallthru
      _
    // Predicated region
    $region26: #{tpu_custom_call.1} parent=1 // pred_check
      _
    $region27: #{tpu_custom_call.1} parent=1 // pred_check_branch
      %32 = sbr.rel (0) target = $region29
    $region28: #{tpu_custom_call.1} parent=1 // pred_region
      _
    $region29: #{tpu_custom_call.1} parent=1 // pred_fallthru
      _
    // Predicated region
    $region30: #{tpu_custom_call.1} parent=1 // pred_check
      _
    $region31: #{tpu_custom_call.1} parent=1 // pred_check_branch
      %34 = sbr.rel (0) target = $region33
    $region32: #{tpu_custom_call.1} parent=1 // pred_region
      _
    $region33: #{tpu_custom_call.1} parent=1 // pred_fallthru
      _
    // Predicated region
    $region34: #{tpu_custom_call.1} parent=1 // pred_check
      _
    $region35: #{tpu_custom_call.1} parent=1 // pred_check_branch
      %36 = sbr.rel (0) target = $region37
    $region36: #{tpu_custom_call.1} parent=1 // pred_region
      _
    $region37: #{tpu_custom_call.1} parent=1 // pred_fallthru
      _
    // Predicated region
    $region38: #{tpu_custom_call.1} parent=1 // pred_check
      _
    $region39: #{tpu_custom_call.1} parent=1 // pred_check_branch
      %38 = sbr.rel (0) target = $region41
    $region40: #{tpu_custom_call.1} parent=1 // pred_region
      _
    $region41: #{tpu_custom_call.1} parent=1 // pred_fallthru
      _
    // Predicated region
    $region42: #{tpu_custom_call.1} parent=1 // pred_check
      _
    $region43: #{tpu_custom_call.1} parent=1 // pred_check_branch
      %40 = sbr.rel (0) target = $region45
    $region44: #{tpu_custom_call.1} parent=1 // pred_region
      _
    $region45: #{tpu_custom_call.1} parent=1 // pred_fallthru
      _
    %v42 = vld [vmem:[%s0] sm:$0x3]
    %v43 = vld [vmem:[%s1] sm:$0xf]
    %v44 = vld [vmem:[%s1 + $0x4] sm:$0xf]
    %v45 = vld [vmem:[%s1 + $0x8] sm:$0xf]
    %v46 = vld [vmem:[%s1 + $0xc] sm:$0xf]
    %v47 = vld [vmem:[%s1 + $0x10] sm:$0xf]
    %v48 = vld [vmem:[%s1 + $0x14] sm:$0xf]
    %v49 = vld [vmem:[%s1 + $0x18] sm:$0xf]
    %v50 = vld [vmem:[%s1 + $0x1c] sm:$0xf]
    %v51 = vld [vmem:[%s1 + $0x20] sm:$0xf]
    %v52 = vld [vmem:[%s1 + $0x24] sm:$0xf]
    %v53 = vld [vmem:[%s1 + $0x28] sm:$0xf]
    %v54 = vld [vmem:[%s1 + $0x2c] sm:$0xf]
    %v55 = vld [vmem:[%s1 + $0x30] sm:$0xf]
    %v56 = vld [vmem:[%s1 + $0x34] sm:$0xf]
    %v57 = vld [vmem:[%s1 + $0x38] sm:$0xf]
    %v58 = vld [vmem:[%s1 + $0x3c] sm:$0xf]
    %v59 = vld [vmem:[%s1 + $0x40] sm:$0xf]
    %v60 = vld [vmem:[%s1 + $0x44] sm:$0xf]
    %v61 = vld [vmem:[%s1 + $0x48] sm:$0xf]
    %v62 = vld [vmem:[%s1 + $0x4c] sm:$0xf]
    %v63 = vld [vmem:[%s1 + $0x50] sm:$0xf]
    %v64 = vld [vmem:[%s1 + $0x54] sm:$0xf]
    %v65 = vld [vmem:[%s1 + $0x58] sm:$0xf]
    %v66 = vld [vmem:[%s1 + $0x5c] sm:$0xf]
    %v67 = vld [vmem:[%s1 + $0x60] sm:$0xf]
    %v68 = vld [vmem:[%s1 + $0x64] sm:$0xf]
    %v69 = vld [vmem:[%s2] sm:$0x1]
    %v71 = vlaneseq
    %v72 = vshrl.u32 %v71, 7
    %v73 = vsub.s32 0, %v72
    %v74 = vrot.slane %v69, %v73
    %v78 = vunpack.c.l.s4 1966171168
    %v79 = vunpack.c.0.s8 %v78
    %v80 = vlaneseq
    %v81 = vshrl.u32 %v80, 7
    %v82 = vsub.s32 %v79, %v81
    %v83 = vrot.slane %v42, %v82
    %v84 = vcombine.high %v83, %v83
    %v86 = vunpack.c.l.s4 1966171168
    %v87 = vunpack.c.0.s8 %v86
    %v88 = vlaneseq
    %v89 = vshrl.u32 %v88, 7
    %v90 = vsub.s32 %v87, %v89
    %v91 = vrot.slane %v83, %v90
    %v93 = vunpack.c.l.s4 1966171168
    %v94 = vunpack.c.0.s8 %v93
    %v95 = vlaneseq
    %v96 = vshrl.u32 %v95, 7
    %v97 = vsub.s32 %v94, %v96
    %v98 = vrot.slane %v84, %v97
    %v126 = vunpack.c.l.b16 %v43
    %v127 = vunpack.c.l.b16 %v44
    %v128 = vunpack.c.l.b16 %v45
    %v129 = vunpack.c.l.b16 %v46
    %v130 = vunpack.c.l.b16 %v47
    %v131 = vunpack.c.l.b16 %v48
    %v132 = vunpack.c.l.b16 %v49
    %v133 = vunpack.c.l.b16 %v50
    %v134 = vunpack.c.l.b16 %v51
    %v135 = vunpack.c.l.b16 %v52
    %v136 = vunpack.c.l.b16 %v53
    %v137 = vunpack.c.l.b16 %v54
    %v138 = vunpack.c.l.b16 %v55
    %v139 = vunpack.c.l.b16 %v56
    %v140 = vunpack.c.l.b16 %v57
    %v141 = vunpack.c.l.b16 %v58
    %v142 = vunpack.c.l.b16 %v59
    %v143 = vunpack.c.l.b16 %v60
    %v144 = vunpack.c.l.b16 %v61
    %v145 = vunpack.c.l.b16 %v62
    %v146 = vunpack.c.l.b16 %v63
    %v147 = vunpack.c.l.b16 %v64
    %v148 = vunpack.c.l.b16 %v65
    %v149 = vunpack.c.l.b16 %v66
    %v150 = vunpack.c.l.b16 %v67
    %v151 = vunpack.c.l.b16 %v68
    %v152 = vpack.c.b16 %v127, %v126
    %v153 = vpack.c.b16 %v129, %v128
    %v154 = vpack.c.b16 %v131, %v130
    %v155 = vpack.c.b16 %v133, %v132
    %v156 = vpack.c.b16 %v135, %v134
    %v157 = vpack.c.b16 %v137, %v136
    %v158 = vpack.c.b16 %v139, %v138
    %v159 = vpack.c.b16 %v141, %v140
    %v160 = vpack.c.b16 %v143, %v142
    %v161 = vpack.c.b16 %v145, %v144
    %v162 = vpack.c.b16 %v147, %v146
    %v163 = vpack.c.b16 %v149, %v148
    %v164 = vpack.c.b16 %v151, %v150
    %vm178 = vcmask 654336
    %v180 = vsel %vm178, %v98, 0
    %182 = vmatprep.subr.bf16.mxu0 0
    %183 = vmatpush1.bf16.msra.mxu0 %v152
    %184 = vmatprep.subr.bf16.mxu0 0
    %185 = vmatpush1.bf16.msra.mxu0 %v153
    %186 = vmatprep.subr.bf16.mxu0 0
    %187 = vmatpush1.bf16.msra.mxu0 %v154
    %188 = vmatprep.subr.bf16.mxu0 0
    %189 = vmatpush1.bf16.msra.mxu0 %v155
    %190 = vmatprep.subr.bf16.mxu0 0
    %191 = vmatpush1.bf16.msra.mxu0 %v156
    %192 = vmatprep.subr.bf16.mxu0 0
    %193 = vmatpush1.bf16.msra.mxu0 %v157
    %194 = vmatprep.subr.bf16.mxu0 0
    %195 = vmatpush1.bf16.msra.mxu0 %v158
    %196 = vmatprep.subr.bf16.mxu0 0
    %197 = vmatpush1.bf16.msra.mxu0 %v159
    %198 = vmatprep.subr.bf16.mxu0 0
    %199 = vmatpush1.bf16.msra.mxu0 %v160
    %200 = vmatprep.subr.bf16.mxu0 0
    %201 = vmatpush1.bf16.msra.mxu0 %v161
    %202 = vmatprep.subr.bf16.mxu0 0
    %203 = vmatpush1.bf16.msra.mxu0 %v162
    %204 = vmatprep.subr.bf16.mxu0 0
    %205 = vmatpush1.bf16.msra.mxu0 %v163
    %206 = vmatprep.subr.bf16.mxu0 0
    %207 = vmatpush1.bf16.msra.mxu0 %v164
    %208 = vmatprep.subr.bf16.mxu0 0
    %209 = vmatpush1.bf16.msra.mxu0 0
    %210 = vmatprep.subr.bf16.mxu0 0
    %211 = vmatpush1.bf16.msra.mxu0 0
    %212 = vmatprep.subr.bf16.mxu0 0
    %213 = vmatpush1.bf16.msra.mxu0 0
    %214 = vmatprep.mubr.bf16.mxu0 %v180
    %215 = vmatmul.mubr.bf16.gmra.mrb[0].mxu0 %v91
    %v216 = vpop.f32.mrb[0].mxu0
    %v217 = vadd.f32 %v74, %v216
    %v218 = vpop.f32.mrb[0].mxu0
    %v219 = vpop.f32.mrb[0].mxu0
    %v220 = vpop.f32.mrb[0].mxu0
    %221 = vdwg.mxu0
    %vm222 = vcmp.gt.f32.partialorder %v217, 0.0
    %v223 = vmul.f32 %v217, 0.1
    %v224 = vsel %vm222, %v217, %v223
    %v225 = vpack.c.bf16 %v224, %v224
    %v226 = vld [vmem:[%s3] sm:$0xf]
    %v227 = vld [vmem:[%s3 + $0x4] sm:$0xf]
    %v228 = vld [vmem:[%s3 + $0x8] sm:$0xf]
    %v229 = vld [vmem:[%s3 + $0xc] sm:$0xf]
    %v230 = vld [vmem:[%s3 + $0x10] sm:$0xf]
    %v231 = vld [vmem:[%s3 + $0x14] sm:$0xf]
    %v232 = vld [vmem:[%s3 + $0x18] sm:$0xf]
    %v233 = vld [vmem:[%s3 + $0x1c] sm:$0xf]
    %v234 = vld [vmem:[%s4] sm:$0x1]
    %v236 = vlaneseq
    %v237 = vshrl.u32 %v236, 7
    %v238 = vsub.s32 0, %v237
    %v239 = vrot.slane %v234, %v238
    %v249 = vunpack.c.l.b16 %v226
    %v250 = vunpack.c.l.b16 %v227
    %v251 = vunpack.c.l.b16 %v228
    %v252 = vunpack.c.l.b16 %v229
    %v253 = vunpack.c.l.b16 %v230
    %v254 = vunpack.c.l.b16 %v231
    %v255 = vunpack.c.l.b16 %v232
    %v256 = vunpack.c.l.b16 %v233
    %v257 = vpack.c.b16 %v250, %v249
    %v258 = vpack.c.b16 %v252, %v251
    %v259 = vpack.c.b16 %v254, %v253
    %v260 = vpack.c.b16 %v256, %v255
    %vm265 = vcmask 523264
    %v267 = vsel %vm265, %v225, 0
    %269 = vmatprep.subr.bf16.mxu0 0
    %270 = vmatpush1.bf16.msra.mxu0 %v257
    %271 = vmatprep.subr.bf16.mxu0 0
    %272 = vmatpush1.bf16.msra.mxu0 %v258
    %273 = vmatprep.subr.bf16.mxu0 0
    %274 = vmatpush1.bf16.msra.mxu0 %v259
    %275 = vmatprep.subr.bf16.mxu0 0
    %276 = vmatpush1.bf16.msra.mxu0 %v260
    %277 = vmatprep.subr.bf16.mxu0 0
    %278 = vmatpush1.bf16.msra.mxu0 0
    %279 = vmatprep.subr.bf16.mxu0 0
    %280 = vmatpush1.bf16.msra.mxu0 0
    %281 = vmatprep.subr.bf16.mxu0 0
    %282 = vmatpush1.bf16.msra.mxu0 0
    %283 = vmatprep.subr.bf16.mxu0 0
    %284 = vmatpush1.bf16.msra.mxu0 0
    %285 = vmatprep.subr.bf16.mxu0 0
    %286 = vmatpush1.bf16.msra.mxu0 0
    %287 = vmatprep.subr.bf16.mxu0 0
    %288 = vmatpush1.bf16.msra.mxu0 0
    %289 = vmatprep.subr.bf16.mxu0 0
    %290 = vmatpush1.bf16.msra.mxu0 0
    %291 = vmatprep.subr.bf16.mxu0 0
    %292 = vmatpush1.bf16.msra.mxu0 0
    %293 = vmatprep.subr.bf16.mxu0 0
    %294 = vmatpush1.bf16.msra.mxu0 0
    %295 = vmatprep.subr.bf16.mxu0 0
    %296 = vmatpush1.bf16.msra.mxu0 0
    %297 = vmatprep.subr.bf16.mxu0 0
    %298 = vmatpush1.bf16.msra.mxu0 0
    %299 = vmatprep.subr.bf16.mxu0 0
    %300 = vmatpush1.bf16.msra.mxu0 0
    %301 = vmatprep.mubr.bf16.mxu0 0
    %302 = vmatmul.mubr.bf16.gmra.mrb[0].mxu0 %v267
    %v303 = vpop.f32.mrb[0].mxu0
    %v304 = vadd.f32 %v239, %v303
    %v305 = vpop.f32.mrb[0].mxu0
    %v306 = vpop.f32.mrb[0].mxu0
    %v307 = vpop.f32.mrb[0].mxu0
    %308 = vdwg.mxu0
    %vm309 = vcmp.gt.f32.partialorder %v304, 0.0
    %v310 = vmul.f32 %v304, 0.1
    %v311 = vsel %vm309, %v304, %v310
    %v312 = vpack.c.bf16 %v311, %v311
    %v313 = vld [vmem:[%s5] sm:$0xf]
    %v314 = vld [vmem:[%s5 + $0x4] sm:$0xf]
    %v315 = vld [vmem:[%s5 + $0x8] sm:$0xf]
    %v316 = vld [vmem:[%s5 + $0xc] sm:$0xf]
    %v317 = vld [vmem:[%s5 + $0x10] sm:$0xf]
    %v318 = vld [vmem:[%s5 + $0x14] sm:$0xf]
    %v319 = vld [vmem:[%s5 + $0x18] sm:$0xf]
    %v320 = vld [vmem:[%s5 + $0x1c] sm:$0xf]
    %v321 = vld [vmem:[%s6] sm:$0x1]
    %v323 = vlaneseq
    %v324 = vshrl.u32 %v323, 7
    %v325 = vsub.s32 0, %v324
    %v326 = vrot.slane %v321, %v325
    %v336 = vunpack.c.l.b16 %v313
    %v337 = vunpack.c.l.b16 %v314
    %v338 = vunpack.c.l.b16 %v315
    %v339 = vunpack.c.l.b16 %v316
    %v340 = vunpack.c.l.b16 %v317
    %v341 = vunpack.c.l.b16 %v318
    %v342 = vunpack.c.l.b16 %v319
    %v343 = vunpack.c.l.b16 %v320
    %v344 = vpack.c.b16 %v337, %v336
    %v345 = vpack.c.b16 %v339, %v338
    %v346 = vpack.c.b16 %v341, %v340
    %v347 = vpack.c.b16 %v343, %v342
    %v353 = vsel %vm265, %v312, 0
    %355 = vmatprep.subr.bf16.mxu0 0
    %356 = vmatpush1.bf16.msra.mxu0 %v344
    %357 = vmatprep.subr.bf16.mxu0 0
    %358 = vmatpush1.bf16.msra.mxu0 %v345
    %359 = vmatprep.subr.bf16.mxu0 0
    %360 = vmatpush1.bf16.msra.mxu0 %v346
    %361 = vmatprep.subr.bf16.mxu0 0
    %362 = vmatpush1.bf16.msra.mxu0 %v347
    %363 = vmatprep.subr.bf16.mxu0 0
    %364 = vmatpush1.bf16.msra.mxu0 0
    %365 = vmatprep.subr.bf16.mxu0 0
    %366 = vmatpush1.bf16.msra.mxu0 0
    %367 = vmatprep.subr.bf16.mxu0 0
    %368 = vmatpush1.bf16.msra.mxu0 0
    %369 = vmatprep.subr.bf16.mxu0 0
    %370 = vmatpush1.bf16.msra.mxu0 0
    %371 = vmatprep.subr.bf16.mxu0 0
    %372 = vmatpush1.bf16.msra.mxu0 0
    %373 = vmatprep.subr.bf16.mxu0 0
    %374 = vmatpush1.bf16.msra.mxu0 0
    %375 = vmatprep.subr.bf16.mxu0 0
    %376 = vmatpush1.bf16.msra.mxu0 0
    %377 = vmatprep.subr.bf16.mxu0 0
    %378 = vmatpush1.bf16.msra.mxu0 0
    %379 = vmatprep.subr.bf16.mxu0 0
    %380 = vmatpush1.bf16.msra.mxu0 0
    %381 = vmatprep.subr.bf16.mxu0 0
    %382 = vmatpush1.bf16.msra.mxu0 0
    %383 = vmatprep.subr.bf16.mxu0 0
    %384 = vmatpush1.bf16.msra.mxu0 0
    %385 = vmatprep.subr.bf16.mxu0 0
    %386 = vmatpush1.bf16.msra.mxu0 0
    %387 = vmatprep.mubr.bf16.mxu0 0
    %388 = vmatmul.mubr.bf16.gmra.mrb[0].mxu0 %v353
    %v389 = vpop.f32.mrb[0].mxu0
    %v390 = vadd.f32 %v326, %v389
    %v391 = vpop.f32.mrb[0].mxu0
    %v392 = vpop.f32.mrb[0].mxu0
    %v393 = vpop.f32.mrb[0].mxu0
    %394 = vdwg.mxu0
    %vm395 = vcmp.gt.f32.partialorder %v390, 0.0
    %v396 = vmul.f32 %v390, 0.1
    %v397 = vsel %vm395, %v390, %v396
    %v398 = vpack.c.bf16 %v397, %v397
    %v399 = vld [vmem:[%s7] sm:$0xf]
    %v400 = vld [vmem:[%s7 + $0x4] sm:$0xf]
    %v401 = vld [vmem:[%s7 + $0x8] sm:$0xf]
    %v402 = vld [vmem:[%s7 + $0xc] sm:$0xf]
    %v403 = vld [vmem:[%s8] sm:$0x1]
    %v405 = vlaneseq
    %v406 = vshrl.u32 %v405, 7
    %v407 = vsub.s32 0, %v406
    %v408 = vrot.slane %v403, %v407
    %v414 = vunpack.c.l.b16 %v399
    %v415 = vunpack.c.l.b16 %v400
    %v416 = vunpack.c.l.b16 %v401
    %v417 = vunpack.c.l.b16 %v402
    %v418 = vpack.c.b16 %v415, %v414
    %v419 = vpack.c.b16 %v417, %v416
    %vm422 = vcmask 261120
    %v424 = vsel %vm422, %v398, 0
    %426 = vmatprep.subr.bf16.mxu0 0
    %427 = vmatpush1.bf16.msra.mxu0 %v418
    %428 = vmatprep.subr.bf16.mxu0 0
    %429 = vmatpush1.bf16.msra.mxu0 %v419
    %430 = vmatprep.subr.bf16.mxu0 0
    %431 = vmatpush1.bf16.msra.mxu0 0
    %432 = vmatprep.subr.bf16.mxu0 0
    %433 = vmatpush1.bf16.msra.mxu0 0
    %434 = vmatprep.subr.bf16.mxu0 0
    %435 = vmatpush1.bf16.msra.mxu0 0
    %436 = vmatprep.subr.bf16.mxu0 0
    %437 = vmatpush1.bf16.msra.mxu0 0
    %438 = vmatprep.subr.bf16.mxu0 0
    %439 = vmatpush1.bf16.msra.mxu0 0
    %440 = vmatprep.subr.bf16.mxu0 0
    %441 = vmatpush1.bf16.msra.mxu0 0
    %442 = vmatprep.subr.bf16.mxu0 0
    %443 = vmatpush1.bf16.msra.mxu0 0
    %444 = vmatprep.subr.bf16.mxu0 0
    %445 = vmatpush1.bf16.msra.mxu0 0
    %446 = vmatprep.subr.bf16.mxu0 0
    %447 = vmatpush1.bf16.msra.mxu0 0
    %448 = vmatprep.subr.bf16.mxu0 0
    %449 = vmatpush1.bf16.msra.mxu0 0
    %450 = vmatprep.subr.bf16.mxu0 0
    %451 = vmatpush1.bf16.msra.mxu0 0
    %452 = vmatprep.subr.bf16.mxu0 0
    %453 = vmatpush1.bf16.msra.mxu0 0
    %454 = vmatprep.subr.bf16.mxu0 0
    %455 = vmatpush1.bf16.msra.mxu0 0
    %456 = vmatprep.subr.bf16.mxu0 0
    %457 = vmatpush1.bf16.msra.mxu0 0
    %458 = vmatprep.mubr.bf16.mxu0 0
    %459 = vmatmul.mubr.bf16.gmra.mrb[0].mxu0 %v424
    %v460 = vpop.f32.mrb[0].mxu0
    %v461 = vadd.f32 %v408, %v460
    %v462 = vpop.f32.mrb[0].mxu0
    %v463 = vpop.f32.mrb[0].mxu0
    %v464 = vpop.f32.mrb[0].mxu0
    %465 = vdwg.mxu0
    %vm466 = vcmp.gt.f32.partialorder %v461, 0.0
    %v467 = vmul.f32 %v461, 0.1
    %v468 = vsel %vm466, %v461, %v467
    %v469 = vld [vmem:[%s9] sm:$0x1]
    %v471 = vlaneseq
    %v472 = vshrl.u32 %v471, 7
    %v473 = vsub.s32 0, %v472
    %v474 = vrot.slane %v469, %v473
    %v476 = vmul.f32 %v468, %v474
    %vm477 = vcmask 254976
    %v478 = vsel %vm477, %v476, 0.0
    %479 = vadd.xlane.f32.xlu0 %v478
    %v480 = vpop.xlane.xlu0 %479
    %v481 = vld [vmem:[#allocation2] sm:$0x1]
    %483 = vset.pattern.permute.xlu0 0
    %484 = vperm.xlu0 %483, %v481
    %v485 = vpop.permute.xlu0 %484
    %v487 = vlaneseq
    %v488 = vshrl.u32 %v487, 7
    %v489 = vsub.s32 0, %v488
    %v490 = vrot.slane %v485, %v489
    %v491 = vadd.f32 %v480, %v490
    %v492 = vmul.f32 %v491, 0.5
    %v493 = vtanh.pop %v492
    %v494 = vmul.f32 %v493, 0.5
    %v495 = vadd.f32 %v494, 0.5
    %v497 = vlaneseq
    %v498 = vand.u32 %v497, 127
    %v499 = vlaneseq
    %v500 = vshrl.u32 %v499, 7
    %v501 = vsub.s32 %v498, %v500
    %v502 = vrot.slane %v495, %v501
    %vm504 = vcmask 8192
    %505 = vst.msk [vmem:[#allocation3] sm:$0x1] %vm504, %v502
    // Predicated region
    $region46: #{tpu_custom_call.1} parent=1 // pred_check
      _
    $region47: #{tpu_custom_call.1} parent=1 // pred_check_branch
      %507 = sbr.rel (0) target = $region49
    $region48: #{tpu_custom_call.1} parent=1 // pred_region
      %s509 = ssub.s32 16, 16
      %510 = vsyncadd [#allocation4], %s509
      %s512 = sshll.u32 [#allocation3], 4
      %s513 = int_to_ptr.vmem [resolvable:$true] %s512
      %515 = dma.vmem_to_hbm [thread:$0]  %s513, 16, %s11, [#allocation4]
    $region49: #{tpu_custom_call.1} parent=1 // pred_fallthru
      _
    // Predicated region
    $region50: #{tpu_custom_call.1} parent=1 // pred_check
      _
    $region51: #{tpu_custom_call.1} parent=1 // pred_check_branch
      %517 = sbr.rel (0) target = $region53
    $region52: #{tpu_custom_call.1} parent=1 // pred_region
      %518 = dma.done [#allocation4], 16
    $region53: #{tpu_custom_call.1} parent=1 // pred_fallthru
      _
    %519 = vsyncpa [#allocation4], 1

</llo_original>
